<compile_context>
chip_gen: v7x
topology: tpu7x:2x2x1
jax: 0.10.0
libtpu: 0.0.40
codegen_flags: <defaults>
</compile_context>

<pallas_src>
import functools

import jax
import jax.numpy as jnp
from jax.experimental import pallas as pl
from jax.experimental.pallas import tpu as pltpu

LANE = 128      # TPU lane width (last-dim padding target for slabs / output)
SUB = 8         # f32 sublane quantum
BF16_SUB = 16   # bf16 sublane packing quantum (one bf16 vreg = [16, 128])
MAX_TB = 1024   # batch-tile rows per grid step (~0.35us/step overhead -> <1%)


def _round_up(x, m):
    return ((x + m - 1) // m) * m


# ----------------------------------------------------------------------------
# Kernel
# ----------------------------------------------------------------------------
def dueling_dqn_kernel(x_ref, w_ref, b_ref, o_ref, *, s_pad):
    """One batch tile of the fused Dueling-DQN forward.

    x_ref: (TB, s_pad) f32 input tile (features zero-padded to s_pad).
    w_ref: (512, 128) bf16 packed weight slab, rows:
        [  0:128)  W1   (state -> fc1)          (real K rows: [0:s_pad))
        [128:256)  W2   (fc1   -> fc2)
        [256:384)  W3   fused  (fc2 -> [fc3_v | fc3_a])
        [384:512)  W4   fused, dueling combine pre-folded
                        ([fc3_v | fc3_a] -> q = val + adv - mean(adv))
    b_ref: (8, 128) f32 bias slab, rows 0..3 for the 4 layers above.
    o_ref: (TB, 128) f32; q-values live in columns [0:action_size).
    """
    b = b_ref[...]

    # fc1 + relu  (bf16 MXU operands, f32 accumulation / elementwise)
    h = jnp.dot(x_ref[...].astype(jnp.bfloat16), w_ref[0:s_pad, :],
                preferred_element_type=jnp.float32)
    h = jnp.maximum(h + b[0:1, :], 0.0)

    # fc2 + relu
    h = jnp.dot(h.astype(jnp.bfloat16), w_ref[1 * LANE:2 * LANE, :],
                preferred_element_type=jnp.float32)
    h = jnp.maximum(h + b[1:2, :], 0.0)

    # fused fc3_v / fc3_a + relu (value stream cols 0:fc3, advantage fc3:2*fc3)
    h = jnp.dot(h.astype(jnp.bfloat16), w_ref[2 * LANE:3 * LANE, :],
                preferred_element_type=jnp.float32)
    h = jnp.maximum(h + b[2:3, :], 0.0)

    # fused fc4: the dueling combine (val + adv - mean(adv)) is folded into the
    # packed weights/bias, so the epilogue is a plain bias-add + unmasked store.
    y = jnp.dot(h.astype(jnp.bfloat16), w_ref[3 * LANE:4 * LANE, :],
                preferred_element_type=jnp.float32)
    o_ref[...] = y + b[3:4, :]


# ----------------------------------------------------------------------------
# Wrapper
# ----------------------------------------------------------------------------
def dueling_dqn_forward(state, w_slab, b_slab, action_size):
    """state: (B, state_size); w_slab/b_slab from pack_params()."""
    B, S = state.shape
    assert S <= LANE and action_size <= LANE

    # Feature-pad to the bf16 sublane quantum (16) so the W1 slab slice in the
    # kernel is tile-aligned.  This is the only wrapper-side padding (no more
    # (B, 128) zero-padded input materialization).
    s_pad = _round_up(max(S, BF16_SUB), BF16_SUB)
    x = state.astype(jnp.float32)
    if s_pad != S:
        x = jnp.pad(x, ((0, 0), (0, s_pad - S)))

    tb = min(MAX_TB, _round_up(B, SUB))
    grid = (pl.cdiv(B, tb),)

    out = pl.pallas_call(
        functools.partial(dueling_dqn_kernel, s_pad=s_pad),
        out_shape=jax.ShapeDtypeStruct((B, LANE), jnp.float32),
        grid=grid,
        in_specs=[
            pl.BlockSpec((tb, s_pad), lambda i: (i, 0)),
            # Weight / bias slabs: constant index_map -> DMA'd once, resident
            # in VMEM across all batch-tile steps.
            pl.BlockSpec((4 * LANE, LANE), lambda i: (0, 0)),
            pl.BlockSpec((SUB, LANE), lambda i: (0, 0)),
        ],
        out_specs=pl.BlockSpec((tb, LANE), lambda i: (i, 0)),
        compiler_params=pltpu.CompilerParams(
            # v7x: shard batch tiles across both TensorCores; no-op on v5e/v6e.
            dimension_semantics=("parallel",)),
    )(x, w_slab, b_slab)

    # q-values live in the first `action_size` lanes.
    return out[:, :action_size]


# ----------------------------------------------------------------------------
# Parameter init / packing
# ----------------------------------------------------------------------------
def init_params(key, state_size, action_size, fc1_size=64, fc2_size=64, fc3_size=32):
    """Deterministic init mimicking torch.nn.Linear default (uniform +-1/sqrt(fan_in))."""
    def linear(k, fan_in, fan_out):
        kw, kb = jax.random.split(k)
        bound = 1.0 / jnp.sqrt(float(fan_in))
        w = jax.random.uniform(kw, (fan_in, fan_out), jnp.float32, -bound, bound)
        b = jax.random.uniform(kb, (1, fan_out), jnp.float32, -bound, bound)
        return w, b

    keys = jax.random.split(key, 6)
    w1, b1 = linear(keys[0], state_size, fc1_size)
    w2, b2 = linear(keys[1], fc1_size, fc2_size)
    w3v, b3v = linear(keys[2], fc2_size, fc3_size)
    w4v, b4v = linear(keys[3], fc3_size, 1)
    w3a, b3a = linear(keys[4], fc2_size, fc3_size)
    w4a, b4a = linear(keys[5], fc3_size, action_size)
    return dict(w1=w1, b1=b1, w2=w2, b2=b2,
                w3v=w3v, b3v=b3v, w4v=w4v, b4v=b4v,
                w3a=w3a, b3a=b3a, w4a=w4a, b4a=b4a)


def _pad2(a, rows, cols):
    r, c = a.shape
    return jnp.pad(a.astype(jnp.float32), ((0, rows - r), (0, cols - c)))


def pack_params(p, state_size, action_size, fc1_size=64, fc2_size=64, fc3_size=32):
    """One-time packing of all layers into two lane-aligned VMEM slabs."""
    A = action_size
    # Bounds required by the fused single-slab 128-lane layout.
    assert state_size <= LANE, "state_size must be <= 128"
    assert fc1_size <= LANE and fc2_size <= LANE, "fc1/fc2 sizes must be <= 128"
    assert 2 * fc3_size <= LANE, "2*fc3_size must be <= 128"
    assert A <= LANE, "action_size must be <= 128"

    # Fused fc3: [w3v | w3a]  -> (fc2, 2*fc3)
    w3 = jnp.concatenate([p["w3v"], p["w3a"]], axis=1)
    b3 = jnp.concatenate([p["b3v"], p["b3a"]], axis=1)

    # Fused fc4 with the dueling combine folded into the weights/bias:
    #   q[:, j] = v_relu @ w4v + b4v + a_relu @ (w4a[:, j] - mean_j w4a)
    #             + (b4a[:, j] - mean_j b4a)
    w4a_c = p["w4a"] - jnp.mean(p["w4a"], axis=1, keepdims=True)   # (fc3, A)
    b4a_c = p["b4a"] - jnp.mean(p["b4a"], axis=1, keepdims=True)   # (1, A)
    w4 = jnp.concatenate([jnp.tile(p["w4v"], (1, A)), w4a_c], axis=0)  # (2*fc3, A)
    b4 = p["b4v"] + b4a_c                                              # (1, A)

    # Weight slab in bf16 (halves the DMA, ~3x fewer MXU passes vs f32).
    w_slab = jnp.concatenate([
        _pad2(p["w1"], LANE, LANE),
        _pad2(p["w2"], LANE, LANE),
        _pad2(w3, LANE, LANE),
        _pad2(w4, LANE, LANE),
    ], axis=0).astype(jnp.bfloat16)                                # (512, 128) bf16

    # Bias slab stays f32 (bias-add / ReLU done in f32 on the VPU).
    b_slab = jnp.concatenate([
        _pad2(p["b1"], 1, LANE),
        _pad2(p["b2"], 1, LANE),
        _pad2(b3, 1, LANE),
        _pad2(b4, 1, LANE),
        jnp.zeros((4, LANE), jnp.float32),
    ], axis=0)                                                     # (8, 128) f32

    return w_slab, b_slab


# ----------------------------------------------------------------------------
# Plain-JAX reference mirroring the PyTorch forward exactly
# ----------------------------------------------------------------------------
def reference_forward(state, p):
    h1 = jax.nn.relu(state @ p["w1"] + p["b1"])
    h2 = jax.nn.relu(h1 @ p["w2"] + p["b2"])
    v = jax.nn.relu(h2 @ p["w3v"] + p["b3v"])
    val = v @ p["w4v"] + p["b4v"]
    a = jax.nn.relu(h2 @ p["w3a"] + p["b3a"])
    adv = a @ p["w4a"] + p["b4a"]
    return val + adv - adv.mean(axis=1, keepdims=True)


if __name__ == "__main__":
    key = jax.random.PRNGKey(0)
    k_params, k_state, k_state_big = jax.random.split(key, 3)

    batch = 2
    state_size = 8
    action_size = 4

    params = init_params(k_params, state_size, action_size)
    w_slab, b_slab = pack_params(params, state_size, action_size)

    # --- small-batch check (grid = 1 step) ---
    state = jax.random.normal(k_state, (batch, state_size), jnp.float32)
    out = jax.block_until_ready(dueling_dqn_forward(state, w_slab, b_slab, action_size))
    ref = reference_forward(state, params)
    assert out.shape == (batch, action_size)
    # bf16 matmul operands -> relaxed tolerance vs. the f32 reference.
    assert jnp.allclose(out, ref, atol=5e-2, rtol=5e-2), "mismatch vs reference (small batch)"

    # --- multi-tile check (exercises the batch grid + resident weight slabs) ---
    big_batch = 1040  # 2 grid steps of 1024 rows (second one partial)
    state_big = jax.random.normal(k_state_big, (big_batch, state_size), jnp.float32)
    out_big = jax.block_until_ready(
        dueling_dqn_forward(state_big, w_slab, b_slab, action_size))
    ref_big = reference_forward(state_big, params)
    assert out_big.shape == (big_batch, action_size)
    assert jnp.allclose(out_big, ref_big, atol=5e-2, rtol=5e-2), \
        "mismatch vs reference (large batch)"

    print("KERNEL_OK")
</pallas_src>

<mosaic_0001>
module attributes {stable_mosaic.version = 11 : i64} {
  func.func @dueling_dqn_kernel(%arg0: i32, %arg1: memref<8x16xf32, #tpu.memory_space<vmem>>, %arg2: memref<512x128xbf16, #tpu.memory_space<vmem>>, %arg3: memref<8x128xf32, #tpu.memory_space<vmem>>, %arg4: memref<8x128xf32, #tpu.memory_space<vmem>>) attributes {dimension_semantics = [#tpu.dimension_semantics<parallel>], iteration_bounds = array<i64: 1>, scalar_prefetch = 0 : i64, scratch_operands = 0 : i64, tpu.core_type = #tpu.core_type<tc>, window_params = [{transform_indices = @transform_0, window_bounds = array<i64: 8, 16>}, {pipeline_mode = #tpu.pipeline_mode<synchronous>, transform_indices = @transform_1, window_bounds = array<i64: 512, 128>}, {pipeline_mode = #tpu.pipeline_mode<synchronous>, transform_indices = @transform_2, window_bounds = array<i64: 8, 128>}, {transform_indices = @transform_3, window_bounds = array<i64: 8, 128>}]} {
    %c0 = arith.constant 0 : index
    %c0_0 = arith.constant 0 : index
    %0 = vector.load %arg3[%c0, %c0_0] : memref<8x128xf32, #tpu.memory_space<vmem>>, vector<8x128xf32>
    %c0_1 = arith.constant 0 : index
    %c0_2 = arith.constant 0 : index
    %1 = vector.load %arg1[%c0_1, %c0_2] : memref<8x16xf32, #tpu.memory_space<vmem>>, vector<8x16xf32>
    %2 = arith.truncf %1 : vector<8x16xf32> to vector<8x16xbf16>
    %c0_3 = arith.constant 0 : index
    %c0_4 = arith.constant 0 : index
    %3 = vector.load %arg2[%c0_3, %c0_4] : memref<512x128xbf16, #tpu.memory_space<vmem>>, vector<16x128xbf16>
    %cst = arith.constant dense<0.000000e+00> : vector<8x128xf32>
    %4 = tpu.matmul %2, %3, %cst {dimension_numbers = #tpu.dot_dimension_numbers<[1], [0], [0], [1], [0, 0, 1, 1], [], []>} : vector<8x16xbf16>, vector<16x128xbf16>, vector<8x128xf32> -> vector<8x128xf32>
    %5 = vector.extract_strided_slice %0 {offsets = [0, 0], sizes = [1, 128], strides = [1, 1]} : vector<8x128xf32> to vector<1x128xf32>
    %6 = vector.broadcast %5 : vector<1x128xf32> to vector<8x128xf32>
    %7 = arith.addf %4, %6 : vector<8x128xf32>
    %cst_5 = arith.constant 0.000000e+00 : f32
    %8 = vector.broadcast %cst_5 : f32 to vector<8x128xf32>
    %9 = arith.maximumf %7, %8 : vector<8x128xf32>
    %10 = arith.truncf %9 : vector<8x128xf32> to vector<8x128xbf16>
    %c128 = arith.constant 128 : index
    %c0_6 = arith.constant 0 : index
    %11 = vector.load %arg2[%c128, %c0_6] : memref<512x128xbf16, #tpu.memory_space<vmem>>, vector<128x128xbf16>
    %cst_7 = arith.constant dense<0.000000e+00> : vector<8x128xf32>
    %12 = tpu.matmul %10, %11, %cst_7 {dimension_numbers = #tpu.dot_dimension_numbers<[1], [0], [0], [1], [0, 0, 1, 1], [], []>} : vector<8x128xbf16>, vector<128x128xbf16>, vector<8x128xf32> -> vector<8x128xf32>
    %13 = vector.extract_strided_slice %0 {offsets = [1, 0], sizes = [1, 128], strides = [1, 1]} : vector<8x128xf32> to vector<1x128xf32>
    %14 = vector.broadcast %13 : vector<1x128xf32> to vector<8x128xf32>
    %15 = arith.addf %12, %14 : vector<8x128xf32>
    %cst_8 = arith.constant 0.000000e+00 : f32
    %16 = vector.broadcast %cst_8 : f32 to vector<8x128xf32>
    %17 = arith.maximumf %15, %16 : vector<8x128xf32>
    %18 = arith.truncf %17 : vector<8x128xf32> to vector<8x128xbf16>
    %c256 = arith.constant 256 : index
    %c0_9 = arith.constant 0 : index
    %19 = vector.load %arg2[%c256, %c0_9] : memref<512x128xbf16, #tpu.memory_space<vmem>>, vector<128x128xbf16>
    %cst_10 = arith.constant dense<0.000000e+00> : vector<8x128xf32>
    %20 = tpu.matmul %18, %19, %cst_10 {dimension_numbers = #tpu.dot_dimension_numbers<[1], [0], [0], [1], [0, 0, 1, 1], [], []>} : vector<8x128xbf16>, vector<128x128xbf16>, vector<8x128xf32> -> vector<8x128xf32>
    %21 = vector.extract_strided_slice %0 {offsets = [2, 0], sizes = [1, 128], strides = [1, 1]} : vector<8x128xf32> to vector<1x128xf32>
    %22 = vector.broadcast %21 : vector<1x128xf32> to vector<8x128xf32>
    %23 = arith.addf %20, %22 : vector<8x128xf32>
    %cst_11 = arith.constant 0.000000e+00 : f32
    %24 = vector.broadcast %cst_11 : f32 to vector<8x128xf32>
    %25 = arith.maximumf %23, %24 : vector<8x128xf32>
    %26 = arith.truncf %25 : vector<8x128xf32> to vector<8x128xbf16>
    %c384 = arith.constant 384 : index
    %c0_12 = arith.constant 0 : index
    %27 = vector.load %arg2[%c384, %c0_12] : memref<512x128xbf16, #tpu.memory_space<vmem>>, vector<128x128xbf16>
    %cst_13 = arith.constant dense<0.000000e+00> : vector<8x128xf32>
    %28 = tpu.matmul %26, %27, %cst_13 {dimension_numbers = #tpu.dot_dimension_numbers<[1], [0], [0], [1], [0, 0, 1, 1], [], []>} : vector<8x128xbf16>, vector<128x128xbf16>, vector<8x128xf32> -> vector<8x128xf32>
    %29 = vector.extract_strided_slice %0 {offsets = [3, 0], sizes = [1, 128], strides = [1, 1]} : vector<8x128xf32> to vector<1x128xf32>
    %30 = vector.broadcast %29 : vector<1x128xf32> to vector<8x128xf32>
    %31 = arith.addf %28, %30 : vector<8x128xf32>
    %c0_14 = arith.constant 0 : index
    %c0_15 = arith.constant 0 : index
    %32 = vector.load %arg4[%c0_14, %c0_15] : memref<8x128xf32, #tpu.memory_space<vmem>>, vector<8x128xf32>
    tpu.vector_store %arg4[%c0_14, %c0_15], %31 {strides = array<i32>} : memref<8x128xf32, #tpu.memory_space<vmem>>, vector<8x128xf32>,
    return
  }
  func.func @transform_0(%arg0: i32) -> (i32, i32) {
    %c0_i32 = arith.constant 0 : i32
    %c0_i32_0 = arith.constant 0 : i32
    return %arg0, %c0_i32 : i32, i32
  }
  func.func @transform_1(%arg0: i32) -> (i32, i32) {
    %c0_i32 = arith.constant 0 : i32
    %c0_i32_0 = arith.constant 0 : i32
    %c0_i32_1 = arith.constant 0 : i32
    return %c0_i32, %c0_i32_0 : i32, i32
  }
  func.func @transform_2(%arg0: i32) -> (i32, i32) {
    %c0_i32 = arith.constant 0 : i32
    %c0_i32_0 = arith.constant 0 : i32
    %c0_i32_1 = arith.constant 0 : i32
    return %c0_i32, %c0_i32_0 : i32, i32
  }
  func.func @transform_3(%arg0: i32) -> (i32, i32) {
    %c0_i32 = arith.constant 0 : i32
    %c0_i32_0 = arith.constant 0 : i32
    return %arg0, %c0_i32 : i32, i32
  }
}

</mosaic_0001>

<llo_original>
// kernel: tpu_custom_call.1
$region0: #{tpu_custom_call.1}
  #allocation0 [shape = 'u32[]', space=smem, size = 0x4, offset = 0x4, fixed_abs, tag = 'smem constant byte address 0x4 - core index']
  #allocation1 [shape = 'u32[144,128]{1,0:T(1,128)}', space=vmem, size = 0x12000, scoped, tag = 'internal scratch']
  %s0 = inlined_call_operand.hbm [shape: f32[2,16], index: 0, kind: input, shape index: {}]
  %s1 = inlined_call_operand.hbm [shape: bf16[512,128], index: 1, kind: input, shape index: {}]
  %s2 = inlined_call_operand.hbm [shape: f32[8,128], index: 2, kind: input, shape index: {}]
  %s3 = inlined_call_operand.hbm [shape: f32[2,128], index: 3, kind: output, shape index: {}]
  %s4 = sld [smem:[#allocation0]]
  $region34: #{tpu_custom_call.1} parent=0
    _
  %s6 = ssub.s32 1, %s4
  %s7 = scalar_select 0, %s6, %s4
  $region1: #{tpu_custom_call.1} parent=0
    #allocation2 [shape = 'u8[4096]{0}', space=vmem, size = 0x1000, scoped, tag = 'input window, operand 0, single buffered']
    #allocation3 [shape = 's32[1]{0}', space=sflag, size = 0x4, scoped, tag = 'scoped memory for tpu_custom_call.1']
    #allocation4 [shape = 's32[1]{0}', space=sflag, size = 0x4, scoped, tag = 'scoped memory for tpu_custom_call.1']
    #allocation5 [shape = 'u8[131072]{0}', space=vmem, size = 0x20000, scoped, tag = 'input window, operand 1, single buffered']
    #allocation6 [shape = 's32[1]{0}', space=sflag, size = 0x4, scoped, tag = 'scoped memory for tpu_custom_call.1']
    #allocation7 [shape = 'u8[4096]{0}', space=vmem, size = 0x1000, scoped, tag = 'input window, operand 2, single buffered']
    #allocation8 [shape = 'u8[4096]{0}', space=vmem, size = 0x1000, scoped, tag = 'output window, operand 0, single buffered']
    %8 = vsyncpa [#allocation3], 0
    %9 = vsyncpa [#allocation6], 0
    %10 = vsyncpa [#allocation4], 0
    // Predicated region
    $region2: #{tpu_custom_call.1} parent=1 // pred_check
      _
    $region3: #{tpu_custom_call.1} parent=1 // pred_check_branch
      %12 = sbr.rel (0) target = $region5
    $region4: #{tpu_custom_call.1} parent=1 // pred_region
      %s14 = ssub.s32 128, 32
      %15 = vsyncadd [#allocation3], %s14
      %s16 = sshll.u32 [#allocation2], 4
      %s17 = int_to_ptr.vmem [resolvable:$true] %s16
      %22 = dma.hbm_to_vmem [thread:$0]  %s0, 32, %s17, [#allocation3], 32, 32, 2
    $region5: #{tpu_custom_call.1} parent=1 // pred_fallthru
      _
    // Predicated region
    $region6: #{tpu_custom_call.1} parent=1 // pred_check
      _
    $region7: #{tpu_custom_call.1} parent=1 // pred_check_branch
      %24 = sbr.rel (0) target = $region9
    $region8: #{tpu_custom_call.1} parent=1 // pred_region
      %s26 = ssub.s32 4096, 4096
      %27 = vsyncadd [#allocation6], %s26
      %s28 = sshll.u32 [#allocation5], 4
      %s29 = int_to_ptr.vmem [resolvable:$true] %s28
      %34 = dma.hbm_to_vmem [thread:$0]  %s1, 4096, %s29, [#allocation6], 64, 64, 4
    $region9: #{tpu_custom_call.1} parent=1 // pred_fallthru
      _
    // Predicated region
    $region10: #{tpu_custom_call.1} parent=1 // pred_check
      _
    $region11: #{tpu_custom_call.1} parent=1 // pred_check_branch
      %36 = sbr.rel (0) target = $region13
    $region12: #{tpu_custom_call.1} parent=1 // pred_region
      %s38 = ssub.s32 128, 128
      %39 = vsyncadd [#allocation6], %s38
      %s41 = sshll.u32 [#allocation7], 4
      %s42 = int_to_ptr.vmem [resolvable:$true] %s41
      %44 = dma.hbm_to_vmem [thread:$0]  %s2, 128, %s42, [#allocation6]
    $region13: #{tpu_custom_call.1} parent=1 // pred_fallthru
      _
    // Predicated region
    $region14: #{tpu_custom_call.1} parent=1 // pred_check
      _
    $region15: #{tpu_custom_call.1} parent=1 // pred_check_branch
      %46 = sbr.rel (0) target = $region17
    $region16: #{tpu_custom_call.1} parent=1 // pred_region
      %47 = dma.done [#allocation3], 128
    $region17: #{tpu_custom_call.1} parent=1 // pred_fallthru
      _
    // Predicated region
    $region18: #{tpu_custom_call.1} parent=1 // pred_check
      _
    $region19: #{tpu_custom_call.1} parent=1 // pred_check_branch
      %49 = sbr.rel (0) target = $region21
    $region20: #{tpu_custom_call.1} parent=1 // pred_region
      %50 = dma.done [#allocation6], 4096
    $region21: #{tpu_custom_call.1} parent=1 // pred_fallthru
      _
    // Predicated region
    $region22: #{tpu_custom_call.1} parent=1 // pred_check
      _
    $region23: #{tpu_custom_call.1} parent=1 // pred_check_branch
      %52 = sbr.rel (0) target = $region25
    $region24: #{tpu_custom_call.1} parent=1 // pred_region
      %53 = dma.done [#allocation6], 128
    $region25: #{tpu_custom_call.1} parent=1 // pred_fallthru
      _
    %v55 = vld [vmem:[#allocation7] sm:$0xff]
    %v56 = vld [vmem:[#allocation2] sm:$0xff]
    %v57 = vpack.c.bf16 %v56, %v56
    %v58 = vld [vmem:[#allocation5] sm:$0xf]
    %v59 = vld [vmem:[#allocation5 + $0x4] sm:$0xf]
    %v60 = vlaneseq
    %v61 = vshrl.u32 %v60, 7
    %v62 = vsub.s32 0, %v61
    %v63 = vrot.slane %v55, %v62
    %v66 = vunpack.c.l.b16 %v58
    %v67 = vunpack.c.l.b16 %v59
    %v68 = vpack.c.b16 %v67, %v66
    %vm70 = vcmask 130048
    %v72 = vsel %vm70, %v57, 0
    %74 = vmatprep.subr.bf16.mxu0 0
    %75 = vmatpush1.bf16.msra.mxu0 %v68
    %76 = vmatprep.subr.bf16.mxu0 0
    %77 = vmatpush1.bf16.msra.mxu0 0
    %78 = vmatprep.subr.bf16.mxu0 0
    %79 = vmatpush1.bf16.msra.mxu0 0
    %80 = vmatprep.subr.bf16.mxu0 0
    %81 = vmatpush1.bf16.msra.mxu0 0
    %82 = vmatprep.subr.bf16.mxu0 0
    %83 = vmatpush1.bf16.msra.mxu0 0
    %84 = vmatprep.subr.bf16.mxu0 0
    %85 = vmatpush1.bf16.msra.mxu0 0
    %86 = vmatprep.subr.bf16.mxu0 0
    %87 = vmatpush1.bf16.msra.mxu0 0
    %88 = vmatprep.subr.bf16.mxu0 0
    %89 = vmatpush1.bf16.msra.mxu0 0
    %90 = vmatprep.subr.bf16.mxu0 0
    %91 = vmatpush1.bf16.msra.mxu0 0
    %92 = vmatprep.subr.bf16.mxu0 0
    %93 = vmatpush1.bf16.msra.mxu0 0
    %94 = vmatprep.subr.bf16.mxu0 0
    %95 = vmatpush1.bf16.msra.mxu0 0
    %96 = vmatprep.subr.bf16.mxu0 0
    %97 = vmatpush1.bf16.msra.mxu0 0
    %98 = vmatprep.subr.bf16.mxu0 0
    %99 = vmatpush1.bf16.msra.mxu0 0
    %100 = vmatprep.subr.bf16.mxu0 0
    %101 = vmatpush1.bf16.msra.mxu0 0
    %102 = vmatprep.subr.bf16.mxu0 0
    %103 = vmatpush1.bf16.msra.mxu0 0
    %104 = vmatprep.subr.bf16.mxu0 0
    %105 = vmatpush1.bf16.msra.mxu0 0
    %106 = vmatprep.mubr.bf16.mxu0 0
    %107 = vmatmul.mubr.bf16.gmra.mrb[0].mxu0 %v72
    %v108 = vpop.f32.mrb[0].mxu0
    %v109 = vadd.f32 %v63, %v108
    %v110 = vpop.f32.mrb[0].mxu0
    %v111 = vpop.f32.mrb[0].mxu0
    %v112 = vpop.f32.mrb[0].mxu0
    %113 = vdwg.mxu0
    %v114 = vmax.f32 %v109, 0.0
    %v115 = vpack.c.bf16 %v114, %v114
    %v116 = vld [vmem:[#allocation5 + $0x40] sm:$0xf]
    %v117 = vld [vmem:[#allocation5 + $0x44] sm:$0xf]
    %v118 = vld [vmem:[#allocation5 + $0x48] sm:$0xf]
    %v119 = vld [vmem:[#allocation5 + $0x4c] sm:$0xf]
    %v120 = vld [vmem:[#allocation5 + $0x50] sm:$0xf]
    %v121 = vld [vmem:[#allocation5 + $0x54] sm:$0xf]
    %v122 = vld [vmem:[#allocation5 + $0x58] sm:$0xf]
    %v123 = vld [vmem:[#allocation5 + $0x5c] sm:$0xf]
    %v124 = vld [vmem:[#allocation5 + $0x60] sm:$0xf]
    %v125 = vld [vmem:[#allocation5 + $0x64] sm:$0xf]
    %v126 = vld [vmem:[#allocation5 + $0x68] sm:$0xf]
    %v127 = vld [vmem:[#allocation5 + $0x6c] sm:$0xf]
    %v128 = vld [vmem:[#allocation5 + $0x70] sm:$0xf]
    %v129 = vld [vmem:[#allocation5 + $0x74] sm:$0xf]
    %v130 = vld [vmem:[#allocation5 + $0x78] sm:$0xf]
    %v131 = vld [vmem:[#allocation5 + $0x7c] sm:$0xf]
    %v132 = vlaneseq
    %v133 = vshrl.u32 %v132, 7
    %v134 = vsub.s32 1, %v133
    %v135 = vrot.slane %v55, %v134
    %v152 = vunpack.c.l.b16 %v116
    %v153 = vunpack.c.l.b16 %v117
    %v154 = vunpack.c.l.b16 %v118
    %v155 = vunpack.c.l.b16 %v119
    %v156 = vunpack.c.l.b16 %v120
    %v157 = vunpack.c.l.b16 %v121
    %v158 = vunpack.c.l.b16 %v122
    %v159 = vunpack.c.l.b16 %v123
    %v160 = vunpack.c.l.b16 %v124
    %v161 = vunpack.c.l.b16 %v125
    %v162 = vunpack.c.l.b16 %v126
    %v163 = vunpack.c.l.b16 %v127
    %v164 = vunpack.c.l.b16 %v128
    %v165 = vunpack.c.l.b16 %v129
    %v166 = vunpack.c.l.b16 %v130
    %v167 = vunpack.c.l.b16 %v131
    %v168 = vpack.c.b16 %v153, %v152
    %v169 = vpack.c.b16 %v155, %v154
    %v170 = vpack.c.b16 %v157, %v156
    %v171 = vpack.c.b16 %v159, %v158
    %v172 = vpack.c.b16 %v161, %v160
    %v173 = vpack.c.b16 %v163, %v162
    %v174 = vpack.c.b16 %v165, %v164
    %v175 = vpack.c.b16 %v167, %v166
    %184 = vmatprep.subr.bf16.mxu0 0
    %185 = vmatpush1.bf16.msra.mxu0 %v168
    %186 = vmatprep.subr.bf16.mxu0 0
    %187 = vmatpush1.bf16.msra.mxu0 %v169
    %188 = vmatprep.subr.bf16.mxu0 0
    %189 = vmatpush1.bf16.msra.mxu0 %v170
    %190 = vmatprep.subr.bf16.mxu0 0
    %191 = vmatpush1.bf16.msra.mxu0 %v171
    %192 = vmatprep.subr.bf16.mxu0 0
    %193 = vmatpush1.bf16.msra.mxu0 %v172
    %194 = vmatprep.subr.bf16.mxu0 0
    %195 = vmatpush1.bf16.msra.mxu0 %v173
    %196 = vmatprep.subr.bf16.mxu0 0
    %197 = vmatpush1.bf16.msra.mxu0 %v174
    %198 = vmatprep.subr.bf16.mxu0 0
    %199 = vmatpush1.bf16.msra.mxu0 %v175
    %200 = vmatprep.subr.bf16.mxu0 0
    %201 = vmatpush1.bf16.msra.mxu0 0
    %202 = vmatprep.subr.bf16.mxu0 0
    %203 = vmatpush1.bf16.msra.mxu0 0
    %204 = vmatprep.subr.bf16.mxu0 0
    %205 = vmatpush1.bf16.msra.mxu0 0
    %206 = vmatprep.subr.bf16.mxu0 0
    %207 = vmatpush1.bf16.msra.mxu0 0
    %208 = vmatprep.subr.bf16.mxu0 0
    %209 = vmatpush1.bf16.msra.mxu0 0
    %210 = vmatprep.subr.bf16.mxu0 0
    %211 = vmatpush1.bf16.msra.mxu0 0
    %212 = vmatprep.subr.bf16.mxu0 0
    %213 = vmatpush1.bf16.msra.mxu0 0
    %214 = vmatprep.subr.bf16.mxu0 0
    %215 = vmatpush1.bf16.msra.mxu0 0
    %216 = vmatprep.mubr.bf16.mxu0 0
    %217 = vmatmul.mubr.bf16.gmra.mrb[0].mxu0 %v115
    %v218 = vpop.f32.mrb[0].mxu0
    %v219 = vadd.f32 %v135, %v218
    %v220 = vpop.f32.mrb[0].mxu0
    %v221 = vpop.f32.mrb[0].mxu0
    %v222 = vpop.f32.mrb[0].mxu0
    %223 = vdwg.mxu0
    %v224 = vmax.f32 %v219, 0.0
    %v225 = vpack.c.bf16 %v224, %v224
    %v226 = vld [vmem:[#allocation5 + $0x80] sm:$0xf]
    %v227 = vld [vmem:[#allocation5 + $0x84] sm:$0xf]
    %v228 = vld [vmem:[#allocation5 + $0x88] sm:$0xf]
    %v229 = vld [vmem:[#allocation5 + $0x8c] sm:$0xf]
    %v230 = vld [vmem:[#allocation5 + $0x90] sm:$0xf]
    %v231 = vld [vmem:[#allocation5 + $0x94] sm:$0xf]
    %v232 = vld [vmem:[#allocation5 + $0x98] sm:$0xf]
    %v233 = vld [vmem:[#allocation5 + $0x9c] sm:$0xf]
    %v234 = vld [vmem:[#allocation5 + $0xa0] sm:$0xf]
    %v235 = vld [vmem:[#allocation5 + $0xa4] sm:$0xf]
    %v236 = vld [vmem:[#allocation5 + $0xa8] sm:$0xf]
    %v237 = vld [vmem:[#allocation5 + $0xac] sm:$0xf]
    %v238 = vld [vmem:[#allocation5 + $0xb0] sm:$0xf]
    %v239 = vld [vmem:[#allocation5 + $0xb4] sm:$0xf]
    %v240 = vld [vmem:[#allocation5 + $0xb8] sm:$0xf]
    %v241 = vld [vmem:[#allocation5 + $0xbc] sm:$0xf]
    %v242 = vlaneseq
    %v243 = vshrl.u32 %v242, 7
    %v244 = vsub.s32 2, %v243
    %v245 = vrot.slane %v55, %v244
    %v262 = vunpack.c.l.b16 %v226
    %v263 = vunpack.c.l.b16 %v227
    %v264 = vunpack.c.l.b16 %v228
    %v265 = vunpack.c.l.b16 %v229
    %v266 = vunpack.c.l.b16 %v230
    %v267 = vunpack.c.l.b16 %v231
    %v268 = vunpack.c.l.b16 %v232
    %v269 = vunpack.c.l.b16 %v233
    %v270 = vunpack.c.l.b16 %v234
    %v271 = vunpack.c.l.b16 %v235
    %v272 = vunpack.c.l.b16 %v236
    %v273 = vunpack.c.l.b16 %v237
    %v274 = vunpack.c.l.b16 %v238
    %v275 = vunpack.c.l.b16 %v239
    %v276 = vunpack.c.l.b16 %v240
    %v277 = vunpack.c.l.b16 %v241
    %v278 = vpack.c.b16 %v263, %v262
    %v279 = vpack.c.b16 %v265, %v264
    %v280 = vpack.c.b16 %v267, %v266
    %v281 = vpack.c.b16 %v269, %v268
    %v282 = vpack.c.b16 %v271, %v270
    %v283 = vpack.c.b16 %v273, %v272
    %v284 = vpack.c.b16 %v275, %v274
    %v285 = vpack.c.b16 %v277, %v276
    %294 = vmatprep.subr.bf16.mxu0 0
    %295 = vmatpush1.bf16.msra.mxu0 %v278
    %296 = vmatprep.subr.bf16.mxu0 0
    %297 = vmatpush1.bf16.msra.mxu0 %v279
    %298 = vmatprep.subr.bf16.mxu0 0
    %299 = vmatpush1.bf16.msra.mxu0 %v280
    %300 = vmatprep.subr.bf16.mxu0 0
    %301 = vmatpush1.bf16.msra.mxu0 %v281
    %302 = vmatprep.subr.bf16.mxu0 0
    %303 = vmatpush1.bf16.msra.mxu0 %v282
    %304 = vmatprep.subr.bf16.mxu0 0
    %305 = vmatpush1.bf16.msra.mxu0 %v283
    %306 = vmatprep.subr.bf16.mxu0 0
    %307 = vmatpush1.bf16.msra.mxu0 %v284
    %308 = vmatprep.subr.bf16.mxu0 0
    %309 = vmatpush1.bf16.msra.mxu0 %v285
    %310 = vmatprep.subr.bf16.mxu0 0
    %311 = vmatpush1.bf16.msra.mxu0 0
    %312 = vmatprep.subr.bf16.mxu0 0
    %313 = vmatpush1.bf16.msra.mxu0 0
    %314 = vmatprep.subr.bf16.mxu0 0
    %315 = vmatpush1.bf16.msra.mxu0 0
    %316 = vmatprep.subr.bf16.mxu0 0
    %317 = vmatpush1.bf16.msra.mxu0 0
    %318 = vmatprep.subr.bf16.mxu0 0
    %319 = vmatpush1.bf16.msra.mxu0 0
    %320 = vmatprep.subr.bf16.mxu0 0
    %321 = vmatpush1.bf16.msra.mxu0 0
    %322 = vmatprep.subr.bf16.mxu0 0
    %323 = vmatpush1.bf16.msra.mxu0 0
    %324 = vmatprep.subr.bf16.mxu0 0
    %325 = vmatpush1.bf16.msra.mxu0 0
    %326 = vmatprep.mubr.bf16.mxu0 0
    %327 = vmatmul.mubr.bf16.gmra.mrb[0].mxu0 %v225
    %v328 = vpop.f32.mrb[0].mxu0
    %v329 = vadd.f32 %v245, %v328
    %v330 = vpop.f32.mrb[0].mxu0
    %v331 = vpop.f32.mrb[0].mxu0
    %v332 = vpop.f32.mrb[0].mxu0
    %333 = vdwg.mxu0
    %v334 = vmax.f32 %v329, 0.0
    %v335 = vpack.c.bf16 %v334, %v334
    %v336 = vld [vmem:[#allocation5 + $0xc0] sm:$0xf]
    %v337 = vld [vmem:[#allocation5 + $0xc4] sm:$0xf]
    %v338 = vld [vmem:[#allocation5 + $0xc8] sm:$0xf]
    %v339 = vld [vmem:[#allocation5 + $0xcc] sm:$0xf]
    %v340 = vld [vmem:[#allocation5 + $0xd0] sm:$0xf]
    %v341 = vld [vmem:[#allocation5 + $0xd4] sm:$0xf]
    %v342 = vld [vmem:[#allocation5 + $0xd8] sm:$0xf]
    %v343 = vld [vmem:[#allocation5 + $0xdc] sm:$0xf]
    %v344 = vld [vmem:[#allocation5 + $0xe0] sm:$0xf]
    %v345 = vld [vmem:[#allocation5 + $0xe4] sm:$0xf]
    %v346 = vld [vmem:[#allocation5 + $0xe8] sm:$0xf]
    %v347 = vld [vmem:[#allocation5 + $0xec] sm:$0xf]
    %v348 = vld [vmem:[#allocation5 + $0xf0] sm:$0xf]
    %v349 = vld [vmem:[#allocation5 + $0xf4] sm:$0xf]
    %v350 = vld [vmem:[#allocation5 + $0xf8] sm:$0xf]
    %v351 = vld [vmem:[#allocation5 + $0xfc] sm:$0xf]
    %v352 = vlaneseq
    %v353 = vshrl.u32 %v352, 7
    %v354 = vsub.s32 3, %v353
    %v355 = vrot.slane %v55, %v354
    %v372 = vunpack.c.l.b16 %v336
    %v373 = vunpack.c.l.b16 %v337
    %v374 = vunpack.c.l.b16 %v338
    %v375 = vunpack.c.l.b16 %v339
    %v376 = vunpack.c.l.b16 %v340
    %v377 = vunpack.c.l.b16 %v341
    %v378 = vunpack.c.l.b16 %v342
    %v379 = vunpack.c.l.b16 %v343
    %v380 = vunpack.c.l.b16 %v344
    %v381 = vunpack.c.l.b16 %v345
    %v382 = vunpack.c.l.b16 %v346
    %v383 = vunpack.c.l.b16 %v347
    %v384 = vunpack.c.l.b16 %v348
    %v385 = vunpack.c.l.b16 %v349
    %v386 = vunpack.c.l.b16 %v350
    %v387 = vunpack.c.l.b16 %v351
    %v388 = vpack.c.b16 %v373, %v372
    %v389 = vpack.c.b16 %v375, %v374
    %v390 = vpack.c.b16 %v377, %v376
    %v391 = vpack.c.b16 %v379, %v378
    %v392 = vpack.c.b16 %v381, %v380
    %v393 = vpack.c.b16 %v383, %v382
    %v394 = vpack.c.b16 %v385, %v384
    %v395 = vpack.c.b16 %v387, %v386
    %404 = vmatprep.subr.bf16.mxu0 0
    %405 = vmatpush1.bf16.msra.mxu0 %v388
    %406 = vmatprep.subr.bf16.mxu0 0
    %407 = vmatpush1.bf16.msra.mxu0 %v389
    %408 = vmatprep.subr.bf16.mxu0 0
    %409 = vmatpush1.bf16.msra.mxu0 %v390
    %410 = vmatprep.subr.bf16.mxu0 0
    %411 = vmatpush1.bf16.msra.mxu0 %v391
    %412 = vmatprep.subr.bf16.mxu0 0
    %413 = vmatpush1.bf16.msra.mxu0 %v392
    %414 = vmatprep.subr.bf16.mxu0 0
    %415 = vmatpush1.bf16.msra.mxu0 %v393
    %416 = vmatprep.subr.bf16.mxu0 0
    %417 = vmatpush1.bf16.msra.mxu0 %v394
    %418 = vmatprep.subr.bf16.mxu0 0
    %419 = vmatpush1.bf16.msra.mxu0 %v395
    %420 = vmatprep.subr.bf16.mxu0 0
    %421 = vmatpush1.bf16.msra.mxu0 0
    %422 = vmatprep.subr.bf16.mxu0 0
    %423 = vmatpush1.bf16.msra.mxu0 0
    %424 = vmatprep.subr.bf16.mxu0 0
    %425 = vmatpush1.bf16.msra.mxu0 0
    %426 = vmatprep.subr.bf16.mxu0 0
    %427 = vmatpush1.bf16.msra.mxu0 0
    %428 = vmatprep.subr.bf16.mxu0 0
    %429 = vmatpush1.bf16.msra.mxu0 0
    %430 = vmatprep.subr.bf16.mxu0 0
    %431 = vmatpush1.bf16.msra.mxu0 0
    %432 = vmatprep.subr.bf16.mxu0 0
    %433 = vmatpush1.bf16.msra.mxu0 0
    %434 = vmatprep.subr.bf16.mxu0 0
    %435 = vmatpush1.bf16.msra.mxu0 0
    %436 = vmatprep.mubr.bf16.mxu0 0
    %437 = vmatmul.mubr.bf16.gmra.mrb[0].mxu0 %v335
    %v438 = vpop.f32.mrb[0].mxu0
    %v439 = vadd.f32 %v355, %v438
    %v440 = vpop.f32.mrb[0].mxu0
    %v441 = vpop.f32.mrb[0].mxu0
    %v442 = vpop.f32.mrb[0].mxu0
    %443 = vdwg.mxu0
    %444 = vst [vmem:[#allocation8] sm:$0xff] %v439
    // Predicated region
    $region26: #{tpu_custom_call.1} parent=1 // pred_check
      _
    $region27: #{tpu_custom_call.1} parent=1 // pred_check_branch
      %446 = sbr.rel (0) target = $region29
    $region28: #{tpu_custom_call.1} parent=1 // pred_region
      %s448 = ssub.s32 128, 32
      %449 = vsyncadd [#allocation4], %s448
      %s450 = sshll.u32 [#allocation8], 4
      %s451 = int_to_ptr.vmem [resolvable:$true] %s450
      %456 = dma.vmem_to_hbm [thread:$0]  %s451, 32, %s3, [#allocation4], 32, 32, 2
    $region29: #{tpu_custom_call.1} parent=1 // pred_fallthru
      _
    // Predicated region
    $region30: #{tpu_custom_call.1} parent=1 // pred_check
      _
    $region31: #{tpu_custom_call.1} parent=1 // pred_check_branch
      %458 = sbr.rel (0) target = $region33
    $region32: #{tpu_custom_call.1} parent=1 // pred_region
      %459 = dma.done [#allocation4], 128
    $region33: #{tpu_custom_call.1} parent=1 // pred_fallthru
      _
    %460 = vsyncpa [#allocation3], 1
    %461 = vsyncpa [#allocation6], 1
    %462 = vsyncpa [#allocation4], 1

</llo_original>
